<compile_context>
chip_gen: v7x
topology: tpu7x:2x2x1
jax: 0.10.0
libtpu: 0.0.40
codegen_flags: <defaults>
</compile_context>

<pallas_src>
import jax
import jax.numpy as jnp
from jax.experimental import pallas as pl
from jax.experimental.pallas import tpu as pltpu

KERNEL_SIZE = 7
PAD = KERNEL_SIZE // 2


def spatial_attention_kernel(x_ref, t_ref, o_ref):
    # x_ref: VMEM (Bt, C, HW)   input block, native dtype
    # t_ref: VMEM (2*HW, HW)    stacked bf16 conv operator (avg rows, max rows)
    # o_ref: VMEM (Bt, C, HW)   output block
    x = x_ref[...]                                   # single load, native dtype

    # Channel reductions on the lane-dense view; accumulate in f32.
    avg = jnp.mean(x, axis=1, dtype=jnp.float32)     # (Bt, HW)
    mx = jnp.max(x, axis=1).astype(jnp.float32)      # (Bt, HW)

    # 7x7 'same' conv over the two reduced planes == ONE fused MXU matmul
    # against the precomputed zero-padding Toeplitz operator:
    #   pre = avg @ T[0] + mx @ T[1]  ==  [avg | mx] @ T_stacked
    feat = jnp.concatenate([avg, mx], axis=-1).astype(jnp.bfloat16)   # (Bt, 2*HW)
    pre = jnp.dot(feat, t_ref[...], preferred_element_type=jnp.float32)

    att = jax.nn.sigmoid(pre)                        # (Bt, HW) f32
    o_ref[...] = (x * att[:, None, :].astype(x.dtype)).astype(o_ref.dtype)


def build_conv_operator(conv_w, H, W):
    """Fold the 7x7, 2->1 channel, zero-padded cross-correlation into a stacked
    (2*HW, HW) bf16 matrix T so that  att_flat = [avg_flat | max_flat] @ T.

    T[c*HW + p_in, p_out] = conv_w[0, c, ki, kj] with ki = h_in - h_out + PAD,
    kj = w_in - w_out + PAD, zero when the tap falls outside the kernel
    (reproducing the 'same' zero padding exactly).
    """
    HW = H * W
    pos = jnp.arange(HW)
    hh = pos // W
    ww = pos % W
    ki = hh[:, None] - hh[None, :] + PAD             # (HW_in, HW_out)
    kj = ww[:, None] - ww[None, :] + PAD
    valid = (ki >= 0) & (ki < KERNEL_SIZE) & (kj >= 0) & (kj < KERNEL_SIZE)
    ki_c = jnp.clip(ki, 0, KERNEL_SIZE - 1)
    kj_c = jnp.clip(kj, 0, KERNEL_SIZE - 1)
    w2 = conv_w.reshape(2, KERNEL_SIZE, KERNEL_SIZE).astype(jnp.float32)
    t = w2[:, ki_c, kj_c]                            # (2, HW, HW)
    t = jnp.where(valid[None, :, :], t, jnp.float32(0.0))
    # bf16 operator: MXU-native single pass, half the VMEM/HBM footprint.
    return t.reshape(2 * HW, HW).astype(jnp.bfloat16)


def _vmem_capacity_bytes():
    """Physical per-core VMEM; conservative (v7x-sized) fallback if unknown."""
    try:
        return int(pltpu.get_tpu_info().vmem_capacity_bytes)
    except Exception:
        return 64 << 20


def _pick_batch_tile(B, bytes_per_batch, t_bytes, vmem_cap):
    """Generation-aware batch tile:
      * target ~4 MiB blocks on 128 MiB-VMEM parts (v5e/v6e, 1 TC/chip) and
        ~2 MiB blocks on 64 MiB parts (v7x) -- per-grid-step overhead is
        ~0.35 us, so blocks should be MiB-scale when the batch allows it;
      * only on v7x (2 TCs/chip) trade tile size for >= 2 'parallel' grid
        steps so the batch axis can be megacore-sharded;
      * respect a VMEM budget of 2x in + 2x out live blocks plus the resident
        operator plus slack.
    """
    small_vmem = vmem_cap <= (64 << 20)              # v7x-class part
    target = (2 << 20) if small_vmem else (4 << 20)
    budget = max(vmem_cap - t_bytes - (8 << 20), 4 << 20)
    bt = min(B,
             max(1, target // bytes_per_batch),
             max(1, budget // (4 * bytes_per_batch)))
    if small_vmem and B >= 2:
        bt = min(bt, (B + 1) // 2)                   # keep >= 2 parallel steps
    return max(1, int(bt))


def spatial_attention(x, conv_w):
    """x: (B, C, H, W), conv_w: (1, 2, 7, 7) -> (B, C, H, W)."""
    B, C, H, W = x.shape
    HW = H * W

    x_flat = x.reshape(B, C, HW)                     # lane-dense minor dim
    t = build_conv_operator(conv_w, H, W)            # (2*HW, HW) bf16
    t_bytes = t.size * t.dtype.itemsize

    vmem_cap = _vmem_capacity_bytes()
    if t_bytes > vmem_cap // 3:
        # TODO(synk): implement the banded per-row-offset (W, W) operator (or a
        # direct 7-tap row conv) for large feature maps; the dense Toeplitz
        # operator is O((H*W)^2) and outgrows v7x's 64 MiB VMEM around ~45x45.
        raise NotImplementedError(
            f"dense conv operator ({t_bytes} B) exceeds 1/3 of VMEM "
            f"({vmem_cap} B); banded fallback not implemented")

    bytes_per_batch = C * HW * x.dtype.itemsize
    bt = _pick_batch_tile(B, bytes_per_batch, t_bytes, vmem_cap)

    # Handle non-divisor / prime batch sizes: pad B up to a multiple of bt.
    num_blocks = -(-B // bt)
    B_pad = num_blocks * bt
    if B_pad != B:
        x_flat = jnp.pad(x_flat, ((0, B_pad - B), (0, 0), (0, 0)))

    # VMEM actually requested: double-buffered in/out blocks + single-buffered
    # operator + slack for Mosaic internals.  Never clamp below the need.
    block_bytes = bt * bytes_per_batch
    need = 4 * block_bytes + t_bytes + (2 << 20)
    vmem_limit = int(min(max(need, 16 << 20), vmem_cap))

    x_spec = pl.BlockSpec((bt, C, HW), lambda i: (i, 0, 0))
    out_spec = pl.BlockSpec((bt, C, HW), lambda i: (i, 0, 0))

    def run(t_spec):
        return pl.pallas_call(
            spatial_attention_kernel,
            out_shape=jax.ShapeDtypeStruct((B_pad, C, HW), x.dtype),
            grid_spec=pltpu.PrefetchScalarGridSpec(
                num_scalar_prefetch=0,
                grid=(num_blocks,),
                in_specs=[x_spec, t_spec],
                out_specs=out_spec,
            ),
            compiler_params=pltpu.CompilerParams(
                dimension_semantics=("parallel",),
                vmem_limit_bytes=vmem_limit),
        )(x_flat, t)

    try:
        # Constant index_map => the default second pipeline buffer is dead
        # VMEM; request single buffering for the resident operator.
        t_spec = pl.BlockSpec((2 * HW, HW), lambda i: (0, 0),
                              pipeline_mode=pl.Buffered(1))
        out_flat = run(t_spec)
    except Exception:
        # Fallback: default (double-buffered) spec — correctness identical,
        # only costs t_bytes of extra VMEM.
        out_flat = run(pl.BlockSpec((2 * HW, HW), lambda i: (0, 0)))

    return out_flat[:B].reshape(B, C, H, W)


def spatial_attention_ref(x, conv_w):
    """Pure-JAX reference mirroring the PyTorch forward."""
    avg = jnp.mean(x, axis=1, keepdims=True)
    mx = jnp.max(x, axis=1, keepdims=True)
    combined = jnp.concatenate([avg, mx], axis=1)            # (B, 2, H, W)
    att = jax.lax.conv_general_dilated(
        combined, conv_w,
        window_strides=(1, 1), padding=((PAD, PAD), (PAD, PAD)),
        dimension_numbers=("NCHW", "OIHW", "NCHW"),
        precision=jax.lax.Precision.HIGHEST)
    return x * jax.nn.sigmoid(att)


if __name__ == "__main__":
    key = jax.random.PRNGKey(0)
    kx, kw = jax.random.split(key)

    B, C, H, W = 2, 4, 16, 16
    x = jax.random.normal(kx, (B, C, H, W), dtype=jnp.float32)
    # (out=1, in=2, 7, 7) conv weight, no bias.
    conv_w = 0.1 * jax.random.normal(kw, (1, 2, KERNEL_SIZE, KERNEL_SIZE),
                                     dtype=jnp.float32)

    out = spatial_attention(x, conv_w)
    out = jax.block_until_ready(out)

    ref = spatial_attention_ref(x, conv_w)
    assert out.shape == (B, C, H, W)
    # Tolerance covers the bf16 MXU operands (operator + reduced features);
    # any structural error (wrong tap / wrong plane) would be O(0.1 - 1).
    max_err = float(jnp.max(jnp.abs(out - ref)))
    assert jnp.allclose(out, ref, atol=2e-2, rtol=2e-2), (
        f"mismatch vs reference, max abs err = {max_err}")

    print("KERNEL_OK")
</pallas_src>

<mosaic_0001>
module attributes {stable_mosaic.version = 11 : i64} {
  func.func @spatial_attention_kernel(%arg0: i32, %arg1: memref<1x4x256xf32, #tpu.memory_space<vmem>>, %arg2: memref<512x256xbf16, #tpu.memory_space<vmem>>, %arg3: memref<1x4x256xf32, #tpu.memory_space<vmem>>) attributes {dimension_semantics = [#tpu.dimension_semantics<parallel>], iteration_bounds = array<i64: 2>, scalar_prefetch = 0 : i64, scratch_operands = 0 : i64, tpu.core_type = #tpu.core_type<tc>, window_params = [{transform_indices = @transform_0, window_bounds = array<i64: 1, 4, 256>}, {pipeline_mode = #tpu.pipeline_mode<synchronous>, transform_indices = @transform_1, window_bounds = array<i64: 512, 256>}, {transform_indices = @transform_2, window_bounds = array<i64: 1, 4, 256>}]} {
    %c0 = arith.constant 0 : index
    %c0_0 = arith.constant 0 : index
    %c0_1 = arith.constant 0 : index
    %0 = vector.load %arg1[%c0, %c0_0, %c0_1] : memref<1x4x256xf32, #tpu.memory_space<vmem>>, vector<1x4x256xf32>
    %cst = arith.constant dense<0.000000e+00> : vector<1x256xf32>
    %1 = vector.multi_reduction <add>, %0, %cst [1] : vector<1x4x256xf32> to vector<1x256xf32>
    %cst_2 = arith.constant 4.000000e+00 : f32
    %2 = vector.broadcast %cst_2 : f32 to vector<1x256xf32>
    %3 = arith.divf %1, %2 : vector<1x256xf32>
    %cst_3 = arith.constant dense<0xFF800000> : vector<1x256xf32>
    %4 = vector.multi_reduction <maximumf>, %0, %cst_3 [1] : vector<1x4x256xf32> to vector<1x256xf32>
    %5 = tpu.concatenate %3, %4 in 1 : vector<1x256xf32>, vector<1x256xf32> -> vector<1x512xf32>
    %6 = arith.truncf %5 : vector<1x512xf32> to vector<1x512xbf16>
    %c0_4 = arith.constant 0 : index
    %c0_5 = arith.constant 0 : index
    %7 = vector.load %arg2[%c0_4, %c0_5] : memref<512x256xbf16, #tpu.memory_space<vmem>>, vector<512x256xbf16>
    %cst_6 = arith.constant dense<0.000000e+00> : vector<1x256xf32>
    %8 = tpu.matmul %6, %7, %cst_6 {dimension_numbers = #tpu.dot_dimension_numbers<[1], [0], [0], [1], [0, 0, 1, 1], [], []>} : vector<1x512xbf16>, vector<512x256xbf16>, vector<1x256xf32> -> vector<1x256xf32>
    %9 = arith.negf %8 : vector<1x256xf32>
    %10 = math.exp %9 : vector<1x256xf32>
    %cst_7 = arith.constant 1.000000e+00 : f32
    %11 = vector.broadcast %cst_7 : f32 to vector<1x256xf32>
    %12 = arith.addf %11, %10 : vector<1x256xf32>
    %13 = arith.divf %11, %12 : vector<1x256xf32>
    %14 = vector.shape_cast %13 : vector<1x256xf32> to vector<1x1x256xf32>
    %15 = vector.broadcast %14 : vector<1x1x256xf32> to vector<1x4x256xf32>
    %16 = arith.mulf %0, %15 : vector<1x4x256xf32>
    %c0_8 = arith.constant 0 : index
    %c0_9 = arith.constant 0 : index
    %c0_10 = arith.constant 0 : index
    %17 = vector.load %arg3[%c0_8, %c0_9, %c0_10] : memref<1x4x256xf32, #tpu.memory_space<vmem>>, vector<1x4x256xf32>
    tpu.vector_store %arg3[%c0_8, %c0_9, %c0_10], %16 {strides = array<i32>} : memref<1x4x256xf32, #tpu.memory_space<vmem>>, vector<1x4x256xf32>,
    return
  }
  func.func @transform_0(%arg0: i32) -> (i32, i32, i32) {
    %c0_i32 = arith.constant 0 : i32
    %c0_i32_0 = arith.constant 0 : i32
    %c0_i32_1 = arith.constant 0 : i32
    return %arg0, %c0_i32, %c0_i32_0 : i32, i32, i32
  }
  func.func @transform_1(%arg0: i32) -> (i32, i32) {
    %c0_i32 = arith.constant 0 : i32
    %c0_i32_0 = arith.constant 0 : i32
    %c0_i32_1 = arith.constant 0 : i32
    return %c0_i32, %c0_i32_0 : i32, i32
  }
  func.func @transform_2(%arg0: i32) -> (i32, i32, i32) {
    %c0_i32 = arith.constant 0 : i32
    %c0_i32_0 = arith.constant 0 : i32
    %c0_i32_1 = arith.constant 0 : i32
    return %arg0, %c0_i32, %c0_i32_0 : i32, i32, i32
  }
}

module attributes {stable_mosaic.version = 11 : i64} {
  func.func @spatial_attention_kernel(%arg0: i32, %arg1: memref<1x4x256xf32, #tpu.memory_space<vmem>>, %arg2: memref<512x256xbf16, #tpu.memory_space<vmem>>, %arg3: memref<1x4x256xf32, #tpu.memory_space<vmem>>) attributes {dimension_semantics = [#tpu.dimension_semantics<parallel>], iteration_bounds = array<i64: 2>, scalar_prefetch = 0 : i64, scratch_operands = 0 : i64, tpu.core_type = #tpu.core_type<tc>, window_params = [{transform_indices = @transform_0, window_bounds = array<i64: 1, 4, 256>}, {pipeline_mode = #tpu.pipeline_mode<synchronous>, transform_indices = @transform_1, window_bounds = array<i64: 512, 256>}, {transform_indices = @transform_2, window_bounds = array<i64: 1, 4, 256>}]} {
    %c0 = arith.constant 0 : index
    %c0_0 = arith.constant 0 : index
    %c0_1 = arith.constant 0 : index
    %0 = vector.load %arg1[%c0, %c0_0, %c0_1] : memref<1x4x256xf32, #tpu.memory_space<vmem>>, vector<1x4x256xf32>
    %cst = arith.constant dense<0.000000e+00> : vector<1x256xf32>
    %1 = vector.multi_reduction <add>, %0, %cst [1] : vector<1x4x256xf32> to vector<1x256xf32>
    %cst_2 = arith.constant 4.000000e+00 : f32
    %2 = vector.broadcast %cst_2 : f32 to vector<1x256xf32>
    %3 = arith.divf %1, %2 : vector<1x256xf32>
    %cst_3 = arith.constant dense<0xFF800000> : vector<1x256xf32>
    %4 = vector.multi_reduction <maximumf>, %0, %cst_3 [1] : vector<1x4x256xf32> to vector<1x256xf32>
    %5 = tpu.concatenate %3, %4 in 1 : vector<1x256xf32>, vector<1x256xf32> -> vector<1x512xf32>
    %6 = arith.truncf %5 : vector<1x512xf32> to vector<1x512xbf16>
    %c0_4 = arith.constant 0 : index
    %c0_5 = arith.constant 0 : index
    %7 = vector.load %arg2[%c0_4, %c0_5] : memref<512x256xbf16, #tpu.memory_space<vmem>>, vector<512x256xbf16>
    %cst_6 = arith.constant dense<0.000000e+00> : vector<1x256xf32>
    %8 = tpu.matmul %6, %7, %cst_6 {dimension_numbers = #tpu.dot_dimension_numbers<[1], [0], [0], [1], [0, 0, 1, 1], [], []>} : vector<1x512xbf16>, vector<512x256xbf16>, vector<1x256xf32> -> vector<1x256xf32>
    %9 = arith.negf %8 : vector<1x256xf32>
    %10 = math.exp %9 : vector<1x256xf32>
    %cst_7 = arith.constant 1.000000e+00 : f32
    %11 = vector.broadcast %cst_7 : f32 to vector<1x256xf32>
    %12 = arith.addf %11, %10 : vector<1x256xf32>
    %13 = arith.divf %11, %12 : vector<1x256xf32>
    %14 = vector.shape_cast %13 : vector<1x256xf32> to vector<1x1x256xf32>
    %15 = vector.broadcast %14 : vector<1x1x256xf32> to vector<1x4x256xf32>
    %16 = arith.mulf %0, %15 : vector<1x4x256xf32>
    %c0_8 = arith.constant 0 : index
    %c0_9 = arith.constant 0 : index
    %c0_10 = arith.constant 0 : index
    %17 = vector.load %arg3[%c0_8, %c0_9, %c0_10] : memref<1x4x256xf32, #tpu.memory_space<vmem>>, vector<1x4x256xf32>
    tpu.vector_store %arg3[%c0_8, %c0_9, %c0_10], %16 {strides = array<i32>} : memref<1x4x256xf32, #tpu.memory_space<vmem>>, vector<1x4x256xf32>,
    return
  }
  func.func @transform_0(%arg0: i32) -> (i32, i32, i32) {
    %c0_i32 = arith.constant 0 : i32
    %c0_i32_0 = arith.constant 0 : i32
    %c0_i32_1 = arith.constant 0 : i32
    return %arg0, %c0_i32, %c0_i32_0 : i32, i32, i32
  }
  func.func @transform_1(%arg0: i32) -> (i32, i32) {
    %c0_i32 = arith.constant 0 : i32
    %c0_i32_0 = arith.constant 0 : i32
    %c0_i32_1 = arith.constant 0 : i32
    return %c0_i32, %c0_i32_0 : i32, i32
  }
  func.func @transform_2(%arg0: i32) -> (i32, i32, i32) {
    %c0_i32 = arith.constant 0 : i32
    %c0_i32_0 = arith.constant 0 : i32
    %c0_i32_1 = arith.constant 0 : i32
    return %arg0, %c0_i32, %c0_i32_0 : i32, i32, i32
  }
}

</mosaic_0001>

<llo_original>
// kernel: tpu_custom_call.1
$region0: #{tpu_custom_call.1}
  #allocation0 [shape = 'u32[]', space=smem, size = 0x4, offset = 0x4, fixed_abs, tag = 'smem constant byte address 0x4 - core index']
  #allocation1 [shape = 'u32[144,128]{1,0:T(1,128)}', space=vmem, size = 0x12000, scoped, tag = 'internal scratch']
  %s0 = inlined_call_operand.hbm [shape: f32[2,4,256], index: 0, kind: input, shape index: {}]
  %s1 = inlined_call_operand.hbm [shape: bf16[512,256], index: 1, kind: input, shape index: {}]
  %s2 = inlined_call_operand.hbm [shape: f32[2,4,256], index: 2, kind: output, shape index: {}]
  %s3 = sld [smem:[#allocation0]]
  $region49: #{tpu_custom_call.1} parent=0
    _
  %s5 = ssub.s32 1, %s3
  %s6 = scalar_select 0, %s5, %s3
  $region1: #{tpu_custom_call.1} parent=0
    #allocation2 [shape = 'u8[8192]{0}', space=vmem, size = 0x2000, scoped, tag = 'input window, operand 0']
    #allocation3 [shape = 's32[2]{0}', space=sflag, size = 0x8, scoped, tag = 'scoped memory for tpu_custom_call.1']
    #allocation4 [shape = 's32[2]{0}', space=sflag, size = 0x8, scoped, tag = 'scoped memory for tpu_custom_call.1']
    #allocation5 [shape = 'u8[262144]{0}', space=vmem, size = 0x40000, scoped, tag = 'input window, operand 1, single buffered']
    #allocation6 [shape = 's32[1]{0}', space=sflag, size = 0x4, scoped, tag = 'scoped memory for tpu_custom_call.1']
    #allocation7 [shape = 'u8[8192]{0}', space=vmem, size = 0x2000, scoped, tag = 'output window, operand 0']
    %7 = vsyncpa [#allocation3], 0
    %s8 = scalar_lea.sflag [#allocation3], 1
    %9 = vsyncpa %s8, 0
    %10 = vsyncpa [#allocation6], 0
    %11 = vsyncpa [#allocation4], 0
    %s12 = scalar_lea.sflag [#allocation4], 1
    %13 = vsyncpa %s12, 0
    loop: start=0, step=1, limit=4
    $region2: #{tpu_custom_call.1} parent=1 // loop_pre_header
      _
    $region3: #{tpu_custom_call.1} parent=1 // loop_header
      %s15 = sphi 0, %s19
      %p16 = scmp.ge.s32.totalorder %s15, 4
      %s25 = sphi 0, %s27
      %s28 = sphi 0, %s25
      %s29 = sphi 0, %s28
      %s45 = sphi 0, %s29
      %s49 = sphi 0, %s49
      %s51 = sphi 0, %s49
      %s52 = sphi 0, %s51
      %s66 = sphi 0, %s52
      %s72 = sphi 0, %s74
      %s75 = sphi 0, %s72
      %s76 = sphi 0, %s75
      %s92 = sphi 0, %s76
    $region4: #{tpu_custom_call.1} parent=1 // loop_header_branch
      %18 = sbr.rel (%p16) target = $region8
    $region5: #{tpu_custom_call.1} parent=1 // loop_body
      %s20 = ssub.s32 %s15, 1
      %s21 = ssub.s32 %s15, 2
      %s22 = sadd.s32 %s15, 1
      %s23 = ssub.s32 %s15, %s22
      %p24 = scmp.eq.s32.totalorder %s23, 0
      %s26 = sadd.s32 %s25, 1
      %s27 = scalar_select %p24, %s25, %s26
      %p30 = pneg %p24
      %p31 = scmp.eq.s32.totalorder %s15, 1
      %p32 = por %p30, %p31
      %p33 = scmp.ne.s32.totalorder %s25, %s28
      %p34 = scmp.eq.s32.totalorder %s15, 0
      %p35 = por %p33, %p34
      %p36 = scmp.ne.s32.totalorder %s25, %s28
      %p37 = scmp.eq.s32.totalorder %s20, 1
      %p38 = por %p36, %p37
      %p39 = scmp.ne.s32.totalorder %s28, %s29
      %p40 = scmp.eq.s32.totalorder %s20, 0
      %p41 = por %p39, %p40
      %p42 = scmp.ne.s32.totalorder %s28, %s29
      %p43 = scmp.eq.s32.totalorder %s21, 1
      %p44 = por %p42, %p43
      %p46 = scmp.ne.s32.totalorder %s29, %s45
      %p47 = scmp.eq.s32.totalorder %s21, 0
      %p48 = por %p46, %p47
      %s50 = sadd.s32 %s49, 1
      %p53 = scmp.eq.s32.totalorder %s15, 1
      %p54 = scmp.ne.s32.totalorder %s49, %s51
      %p55 = scmp.eq.s32.totalorder %s15, 0
      %p56 = por %p54, %p55
      %p57 = scmp.ne.s32.totalorder %s49, %s51
      %p58 = scmp.eq.s32.totalorder %s20, 1
      %p59 = por %p57, %p58
      %p60 = scmp.ne.s32.totalorder %s51, %s52
      %p61 = scmp.eq.s32.totalorder %s20, 0
      %p62 = por %p60, %p61
      %p63 = scmp.ne.s32.totalorder %s51, %s52
      %p64 = scmp.eq.s32.totalorder %s21, 1
      %p65 = por %p63, %p64
      %p67 = scmp.ne.s32.totalorder %s52, %s66
      %p68 = scmp.eq.s32.totalorder %s21, 0
      %p69 = por %p67, %p68
      %s70 = ssub.s32 %s15, %s22
      %p71 = scmp.eq.s32.totalorder %s70, 0
      %s73 = sadd.s32 %s72, 1
      %s74 = scalar_select %p71, %s72, %s73
      %p77 = pneg %p71
      %p78 = scmp.eq.s32.totalorder %s15, 1
      %p79 = por %p77, %p78
      %p80 = scmp.ne.s32.totalorder %s72, %s75
      %p81 = scmp.eq.s32.totalorder %s15, 0
      %p82 = por %p80, %p81
      %p83 = scmp.ne.s32.totalorder %s72, %s75
      %p84 = scmp.eq.s32.totalorder %s20, 1
      %p85 = por %p83, %p84
      %p86 = scmp.ne.s32.totalorder %s75, %s76
      %p87 = scmp.eq.s32.totalorder %s20, 0
      %p88 = por %p86, %p87
      %p89 = scmp.ne.s32.totalorder %s75, %s76
      %p90 = scmp.eq.s32.totalorder %s21, 1
      %p91 = por %p89, %p90
      %p93 = scmp.ne.s32.totalorder %s76, %s92
      %p94 = scmp.eq.s32.totalorder %s21, 0
      %p95 = por %p93, %p94
      %p96 = scmp.le.s32.totalorder 1, %s15
      %p97 = scmp.lt.s32.totalorder %s15, 3
      %p98 = pnand %p96, %p97
      %p99 = pneg %p98
      // Predicated region
      $region9: #{tpu_custom_call.1} parent=5 // pred_check
        _
      $region10: #{tpu_custom_call.1} parent=5 // pred_check_branch
        %101 = sbr.rel (%p98) target = $region12
      $region11: #{tpu_custom_call.1} parent=5 // pred_region
        %s102 = ssub.s32 %s15, 1
        // Predicated region
        $region13: #{tpu_custom_call.1} parent=11 // pred_check
          %p103 = pneg %p62
        $region14: #{tpu_custom_call.1} parent=11 // pred_check_branch
          %105 = sbr.rel (%p103) target = $region16
        $region15: #{tpu_custom_call.1} parent=11 // pred_region
          %s107 = ssub.s32 8192, 8192
          %108 = vsyncadd [#allocation6], %s107
          %s109 = sshll.u32 [#allocation5], 4
          %s110 = int_to_ptr.vmem [resolvable:$true] %s109
          %115 = dma.hbm_to_vmem [thread:$0]  %s1, 8192, %s110, [#allocation6], 128, 128, 8
        $region16: #{tpu_custom_call.1} parent=11 // pred_fallthru
          _
      $region12: #{tpu_custom_call.1} parent=5 // pred_fallthru
        _
      %p116 = scmp.lt.s32.totalorder %s15, 2
      // Predicated region
      $region17: #{tpu_custom_call.1} parent=5 // pred_check
        %p117 = pneg %p116
      $region18: #{tpu_custom_call.1} parent=5 // pred_check_branch
        %119 = sbr.rel (%p117) target = $region20
      $region19: #{tpu_custom_call.1} parent=5 // pred_region
        // Predicated region
        $region21: #{tpu_custom_call.1} parent=19 // pred_check
          %p120 = pneg %p35
        $region22: #{tpu_custom_call.1} parent=19 // pred_check_branch
          %122 = sbr.rel (%p120) target = $region24
        $region23: #{tpu_custom_call.1} parent=19 // pred_region
          %s123 = sand.u32 %s25, 1
          %s124 = scalar_lea.sflag [#allocation3], %s123
          %s125 = sand.u32 %s25, 1
          %s126 = smul.addr %s125, 8
          %s127 = scalar_lea.vmem [#allocation2], %s126
          %s129 = ssub.s32 128, 128
          %130 = vsyncadd %s124, %s129
          %s131 = smul.addr %s15, 2
          %s132 = smul.addr %s131, 64
          %s133 = scalar_lea.hbm %s0, %s132
          %s135 = sshll.u32 %s127, 4
          %s136 = int_to_ptr.vmem [resolvable:$true] %s135
          %138 = dma.hbm_to_vmem [thread:$0]  %s133, 128, %s136, %s124
        $region24: #{tpu_custom_call.1} parent=19 // pred_fallthru
          _
      $region20: #{tpu_custom_call.1} parent=5 // pred_fallthru
        _
      %p139 = scmp.le.s32.totalorder 1, %s15
      %p140 = scmp.lt.s32.totalorder %s15, 3
      %p141 = pnand %p139, %p140
      %p142 = pneg %p141
      // Predicated region
      $region25: #{tpu_custom_call.1} parent=5 // pred_check
        _
      $region26: #{tpu_custom_call.1} parent=5 // pred_check_branch
        %144 = sbr.rel (%p141) target = $region28
      $region27: #{tpu_custom_call.1} parent=5 // pred_region
        %s145 = ssub.s32 %s15, 1
        %s146 = sand.u32 %s28, 1
        %s147 = scalar_lea.sflag [#allocation3], %s146
        %s148 = sand.u32 %s28, 1
        %s149 = smul.addr %s148, 8
        %s150 = scalar_lea.vmem [#allocation2], %s149
        // Predicated region
        $region29: #{tpu_custom_call.1} parent=27 // pred_check
          %p151 = pneg %p41
        $region30: #{tpu_custom_call.1} parent=27 // pred_check_branch
          %153 = sbr.rel (%p151) target = $region32
        $region31: #{tpu_custom_call.1} parent=27 // pred_region
          %154 = dma.done %s147, 128
        $region32: #{tpu_custom_call.1} parent=27 // pred_fallthru
          _
        // Predicated region
        $region33: #{tpu_custom_call.1} parent=27 // pred_check
          %p155 = pneg %p62
        $region34: #{tpu_custom_call.1} parent=27 // pred_check_branch
          %157 = sbr.rel (%p155) target = $region36
        $region35: #{tpu_custom_call.1} parent=27 // pred_region
          %158 = dma.done [#allocation6], 8192
        $region36: #{tpu_custom_call.1} parent=27 // pred_fallthru
          _
        %s159 = sand.u32 %s28, 1
        %s160 = scalar_lea.sflag [#allocation3], %s159
        %s161 = sand.u32 %s28, 1
        %s162 = smul.addr %s161, 8
        %s163 = scalar_lea.vmem [#allocation2], %s162
        %p164 = pneg %p41
        %p165 = pneg %p38
        %p166 = pneg %p62
        %p167 = pneg %p59
        %p168 = pneg %p88
        %p169 = pneg %p85
        %s170 = sand.u32 %s75, 1
        %s171 = scalar_lea.sflag [#allocation4], %s170
        %s172 = sand.u32 %s75, 1
        %s173 = smul.addr %s172, 8
        %s174 = scalar_lea.vmem [#allocation7], %s173
        %v175 = vld [vmem:[%s150] sm:$0xff]
        %v177 = vcombine.high %v175, %v175
        %vm179 = vcmask 1043456
        %v180 = vsel %vm179, %v175, 0.0
        %v181 = vrot.slane %v180, 4
        %v182 = vadd.f32 %v180, %v181
        %v183 = vrot.slane %v182, 2
        %v184 = vadd.f32 %v182, %v183
        %v185 = vrot.slane %v184, 1
        %v186 = vadd.f32 %v184, %v185
        %v187 = vsel %vm179, %v177, 0.0
        %v188 = vrot.slane %v187, 4
        %v189 = vadd.f32 %v187, %v188
        %v190 = vrot.slane %v189, 2
        %v191 = vadd.f32 %v189, %v190
        %v192 = vrot.slane %v191, 1
        %v193 = vadd.f32 %v191, %v192
        %v194 = vrcp.pop 4.0
        %v195 = vmul.f32 %v186, %v194
        %v196 = vmul.f32 %v193, %v194
        %v197 = vsel %vm179, %v175, -inf
        %v198 = vrot.slane %v197, 4
        %v199 = vmax.f32 %v197, %v198
        %v200 = vrot.slane %v199, 2
        %v201 = vmax.f32 %v199, %v200
        %v202 = vrot.slane %v201, 1
        %v203 = vmax.f32 %v201, %v202
        %v204 = vsel %vm179, %v177, -inf
        %v205 = vrot.slane %v204, 4
        %v206 = vmax.f32 %v204, %v205
        %v207 = vrot.slane %v206, 2
        %v208 = vmax.f32 %v206, %v207
        %v209 = vrot.slane %v208, 1
        %v210 = vmax.f32 %v208, %v209
        %v211 = vpack.c.bf16 %v195, %v195
        %v212 = vpack.c.bf16 %v196, %v196
        %v213 = vpack.c.bf16 %v203, %v203
        %v214 = vpack.c.bf16 %v210, %v210
        %v215 = vld [vmem:[#allocation5] sm:$0xff]
        %v216 = vld [vmem:[#allocation5 + $0x8] sm:$0xff]
        %v217 = vld [vmem:[#allocation5 + $0x10] sm:$0xff]
        %v218 = vld [vmem:[#allocation5 + $0x18] sm:$0xff]
        %v219 = vld [vmem:[#allocation5 + $0x20] sm:$0xff]
        %v220 = vld [vmem:[#allocation5 + $0x28] sm:$0xff]
        %v221 = vld [vmem:[#allocation5 + $0x30] sm:$0xff]
        %v222 = vld [vmem:[#allocation5 + $0x38] sm:$0xff]
        %v223 = vld [vmem:[#allocation5 + $0x40] sm:$0xff]
        %v224 = vld [vmem:[#allocation5 + $0x48] sm:$0xff]
        %v225 = vld [vmem:[#allocation5 + $0x50] sm:$0xff]
        %v226 = vld [vmem:[#allocation5 + $0x58] sm:$0xff]
        %v227 = vld [vmem:[#allocation5 + $0x60] sm:$0xff]
        %v228 = vld [vmem:[#allocation5 + $0x68] sm:$0xff]
        %v229 = vld [vmem:[#allocation5 + $0x70] sm:$0xff]
        %v230 = vld [vmem:[#allocation5 + $0x78] sm:$0xff]
        %v231 = vld [vmem:[#allocation5 + $0x80] sm:$0xff]
        %v232 = vld [vmem:[#allocation5 + $0x88] sm:$0xff]
        %v233 = vld [vmem:[#allocation5 + $0x90] sm:$0xff]
        %v234 = vld [vmem:[#allocation5 + $0x98] sm:$0xff]
        %v235 = vld [vmem:[#allocation5 + $0xa0] sm:$0xff]
        %v236 = vld [vmem:[#allocation5 + $0xa8] sm:$0xff]
        %v237 = vld [vmem:[#allocation5 + $0xb0] sm:$0xff]
        %v238 = vld [vmem:[#allocation5 + $0xb8] sm:$0xff]
        %v239 = vld [vmem:[#allocation5 + $0xc0] sm:$0xff]
        %v240 = vld [vmem:[#allocation5 + $0xc8] sm:$0xff]
        %v241 = vld [vmem:[#allocation5 + $0xd0] sm:$0xff]
        %v242 = vld [vmem:[#allocation5 + $0xd8] sm:$0xff]
        %v243 = vld [vmem:[#allocation5 + $0xe0] sm:$0xff]
        %v244 = vld [vmem:[#allocation5 + $0xe8] sm:$0xff]
        %v245 = vld [vmem:[#allocation5 + $0xf0] sm:$0xff]
        %v246 = vld [vmem:[#allocation5 + $0xf8] sm:$0xff]
        %v247 = vld [vmem:[#allocation5 + $0x100] sm:$0xff]
        %v248 = vld [vmem:[#allocation5 + $0x108] sm:$0xff]
        %v249 = vld [vmem:[#allocation5 + $0x110] sm:$0xff]
        %v250 = vld [vmem:[#allocation5 + $0x118] sm:$0xff]
        %v251 = vld [vmem:[#allocation5 + $0x120] sm:$0xff]
        %v252 = vld [vmem:[#allocation5 + $0x128] sm:$0xff]
        %v253 = vld [vmem:[#allocation5 + $0x130] sm:$0xff]
        %v254 = vld [vmem:[#allocation5 + $0x138] sm:$0xff]
        %v255 = vld [vmem:[#allocation5 + $0x140] sm:$0xff]
        %v256 = vld [vmem:[#allocation5 + $0x148] sm:$0xff]
        %v257 = vld [vmem:[#allocation5 + $0x150] sm:$0xff]
        %v258 = vld [vmem:[#allocation5 + $0x158] sm:$0xff]
        %v259 = vld [vmem:[#allocation5 + $0x160] sm:$0xff]
        %v260 = vld [vmem:[#allocation5 + $0x168] sm:$0xff]
        %v261 = vld [vmem:[#allocation5 + $0x170] sm:$0xff]
        %v262 = vld [vmem:[#allocation5 + $0x178] sm:$0xff]
        %v263 = vld [vmem:[#allocation5 + $0x180] sm:$0xff]
        %v264 = vld [vmem:[#allocation5 + $0x188] sm:$0xff]
        %v265 = vld [vmem:[#allocation5 + $0x190] sm:$0xff]
        %v266 = vld [vmem:[#allocation5 + $0x198] sm:$0xff]
        %v267 = vld [vmem:[#allocation5 + $0x1a0] sm:$0xff]
        %v268 = vld [vmem:[#allocation5 + $0x1a8] sm:$0xff]
        %v269 = vld [vmem:[#allocation5 + $0x1b0] sm:$0xff]
        %v270 = vld [vmem:[#allocation5 + $0x1b8] sm:$0xff]
        %v271 = vld [vmem:[#allocation5 + $0x1c0] sm:$0xff]
        %v272 = vld [vmem:[#allocation5 + $0x1c8] sm:$0xff]
        %v273 = vld [vmem:[#allocation5 + $0x1d0] sm:$0xff]
        %v274 = vld [vmem:[#allocation5 + $0x1d8] sm:$0xff]
        %v275 = vld [vmem:[#allocation5 + $0x1e0] sm:$0xff]
        %v276 = vld [vmem:[#allocation5 + $0x1e8] sm:$0xff]
        %v277 = vld [vmem:[#allocation5 + $0x1f0] sm:$0xff]
        %v278 = vld [vmem:[#allocation5 + $0x1f8] sm:$0xff]
        %v343 = vunpack.c.l.b16 %v215
        %v344 = vunpack.c.h.b16 %v215
        %v345 = vunpack.c.l.b16 %v216
        %v346 = vunpack.c.h.b16 %v216
        %v347 = vunpack.c.l.b16 %v217
        %v348 = vunpack.c.h.b16 %v217
        %v349 = vunpack.c.l.b16 %v218
        %v350 = vunpack.c.h.b16 %v218
        %v351 = vunpack.c.l.b16 %v219
        %v352 = vunpack.c.h.b16 %v219
        %v353 = vunpack.c.l.b16 %v220
        %v354 = vunpack.c.h.b16 %v220
        %v355 = vunpack.c.l.b16 %v221
        %v356 = vunpack.c.h.b16 %v221
        %v357 = vunpack.c.l.b16 %v222
        %v358 = vunpack.c.h.b16 %v222
        %v359 = vunpack.c.l.b16 %v223
        %v360 = vunpack.c.h.b16 %v223
        %v361 = vunpack.c.l.b16 %v224
        %v362 = vunpack.c.h.b16 %v224
        %v363 = vunpack.c.l.b16 %v225
        %v364 = vunpack.c.h.b16 %v225
        %v365 = vunpack.c.l.b16 %v226
        %v366 = vunpack.c.h.b16 %v226
        %v367 = vunpack.c.l.b16 %v227
        %v368 = vunpack.c.h.b16 %v227
        %v369 = vunpack.c.l.b16 %v228
        %v370 = vunpack.c.h.b16 %v228
        %v371 = vunpack.c.l.b16 %v229
        %v372 = vunpack.c.h.b16 %v229
        %v373 = vunpack.c.l.b16 %v230
        %v374 = vunpack.c.h.b16 %v230
        %v375 = vunpack.c.l.b16 %v231
        %v376 = vunpack.c.h.b16 %v231
        %v377 = vunpack.c.l.b16 %v232
        %v378 = vunpack.c.h.b16 %v232
        %v379 = vunpack.c.l.b16 %v233
        %v380 = vunpack.c.h.b16 %v233
        %v381 = vunpack.c.l.b16 %v234
        %v382 = vunpack.c.h.b16 %v234
        %v383 = vunpack.c.l.b16 %v235
        %v384 = vunpack.c.h.b16 %v235
        %v385 = vunpack.c.l.b16 %v236
        %v386 = vunpack.c.h.b16 %v236
        %v387 = vunpack.c.l.b16 %v237
        %v388 = vunpack.c.h.b16 %v237
        %v389 = vunpack.c.l.b16 %v238
        %v390 = vunpack.c.h.b16 %v238
        %v391 = vunpack.c.l.b16 %v239
        %v392 = vunpack.c.h.b16 %v239
        %v393 = vunpack.c.l.b16 %v240
        %v394 = vunpack.c.h.b16 %v240
        %v395 = vunpack.c.l.b16 %v241
        %v396 = vunpack.c.h.b16 %v241
        %v397 = vunpack.c.l.b16 %v242
        %v398 = vunpack.c.h.b16 %v242
        %v399 = vunpack.c.l.b16 %v243
        %v400 = vunpack.c.h.b16 %v243
        %v401 = vunpack.c.l.b16 %v244
        %v402 = vunpack.c.h.b16 %v244
        %v403 = vunpack.c.l.b16 %v245
        %v404 = vunpack.c.h.b16 %v245
        %v405 = vunpack.c.l.b16 %v246
        %v406 = vunpack.c.h.b16 %v246
        %v407 = vunpack.c.l.b16 %v247
        %v408 = vunpack.c.h.b16 %v247
        %v409 = vunpack.c.l.b16 %v248
        %v410 = vunpack.c.h.b16 %v248
        %v411 = vunpack.c.l.b16 %v249
        %v412 = vunpack.c.h.b16 %v249
        %v413 = vunpack.c.l.b16 %v250
        %v414 = vunpack.c.h.b16 %v250
        %v415 = vunpack.c.l.b16 %v251
        %v416 = vunpack.c.h.b16 %v251
        %v417 = vunpack.c.l.b16 %v252
        %v418 = vunpack.c.h.b16 %v252
        %v419 = vunpack.c.l.b16 %v253
        %v420 = vunpack.c.h.b16 %v253
        %v421 = vunpack.c.l.b16 %v254
        %v422 = vunpack.c.h.b16 %v254
        %v423 = vunpack.c.l.b16 %v255
        %v424 = vunpack.c.h.b16 %v255
        %v425 = vunpack.c.l.b16 %v256
        %v426 = vunpack.c.h.b16 %v256
        %v427 = vunpack.c.l.b16 %v257
        %v428 = vunpack.c.h.b16 %v257
        %v429 = vunpack.c.l.b16 %v258
        %v430 = vunpack.c.h.b16 %v258
        %v431 = vunpack.c.l.b16 %v259
        %v432 = vunpack.c.h.b16 %v259
        %v433 = vunpack.c.l.b16 %v260
        %v434 = vunpack.c.h.b16 %v260
        %v435 = vunpack.c.l.b16 %v261
        %v436 = vunpack.c.h.b16 %v261
        %v437 = vunpack.c.l.b16 %v262
        %v438 = vunpack.c.h.b16 %v262
        %v439 = vunpack.c.l.b16 %v263
        %v440 = vunpack.c.h.b16 %v263
        %v441 = vunpack.c.l.b16 %v264
        %v442 = vunpack.c.h.b16 %v264
        %v443 = vunpack.c.l.b16 %v265
        %v444 = vunpack.c.h.b16 %v265
        %v445 = vunpack.c.l.b16 %v266
        %v446 = vunpack.c.h.b16 %v266
        %v447 = vunpack.c.l.b16 %v267
        %v448 = vunpack.c.h.b16 %v267
        %v449 = vunpack.c.l.b16 %v268
        %v450 = vunpack.c.h.b16 %v268
        %v451 = vunpack.c.l.b16 %v269
        %v452 = vunpack.c.h.b16 %v269
        %v453 = vunpack.c.l.b16 %v270
        %v454 = vunpack.c.h.b16 %v270
        %v455 = vunpack.c.l.b16 %v271
        %v456 = vunpack.c.h.b16 %v271
        %v457 = vunpack.c.l.b16 %v272
        %v458 = vunpack.c.h.b16 %v272
        %v459 = vunpack.c.l.b16 %v273
        %v460 = vunpack.c.h.b16 %v273
        %v461 = vunpack.c.l.b16 %v274
        %v462 = vunpack.c.h.b16 %v274
        %v463 = vunpack.c.l.b16 %v275
        %v464 = vunpack.c.h.b16 %v275
        %v465 = vunpack.c.l.b16 %v276
        %v466 = vunpack.c.h.b16 %v276
        %v467 = vunpack.c.l.b16 %v277
        %v468 = vunpack.c.h.b16 %v277
        %v469 = vunpack.c.l.b16 %v278
        %v470 = vunpack.c.h.b16 %v278
        %v471 = vpack.c.b16 %v345, %v343
        %v472 = vpack.c.b16 %v346, %v344
        %v473 = vpack.c.b16 %v349, %v347
        %v474 = vpack.c.b16 %v350, %v348
        %v475 = vpack.c.b16 %v353, %v351
        %v476 = vpack.c.b16 %v354, %v352
        %v477 = vpack.c.b16 %v357, %v355
        %v478 = vpack.c.b16 %v358, %v356
        %v479 = vpack.c.b16 %v361, %v359
        %v480 = vpack.c.b16 %v362, %v360
        %v481 = vpack.c.b16 %v365, %v363
        %v482 = vpack.c.b16 %v366, %v364
        %v483 = vpack.c.b16 %v369, %v367
        %v484 = vpack.c.b16 %v370, %v368
        %v485 = vpack.c.b16 %v373, %v371
        %v486 = vpack.c.b16 %v374, %v372
        %v487 = vpack.c.b16 %v377, %v375
        %v488 = vpack.c.b16 %v378, %v376
        %v489 = vpack.c.b16 %v381, %v379
        %v490 = vpack.c.b16 %v382, %v380
        %v491 = vpack.c.b16 %v385, %v383
        %v492 = vpack.c.b16 %v386, %v384
        %v493 = vpack.c.b16 %v389, %v387
        %v494 = vpack.c.b16 %v390, %v388
        %v495 = vpack.c.b16 %v393, %v391
        %v496 = vpack.c.b16 %v394, %v392
        %v497 = vpack.c.b16 %v397, %v395
        %v498 = vpack.c.b16 %v398, %v396
        %v499 = vpack.c.b16 %v401, %v399
        %v500 = vpack.c.b16 %v402, %v400
        %v501 = vpack.c.b16 %v405, %v403
        %v502 = vpack.c.b16 %v406, %v404
        %v503 = vpack.c.b16 %v409, %v407
        %v504 = vpack.c.b16 %v410, %v408
        %v505 = vpack.c.b16 %v413, %v411
        %v506 = vpack.c.b16 %v414, %v412
        %v507 = vpack.c.b16 %v417, %v415
        %v508 = vpack.c.b16 %v418, %v416
        %v509 = vpack.c.b16 %v421, %v419
        %v510 = vpack.c.b16 %v422, %v420
        %v511 = vpack.c.b16 %v425, %v423
        %v512 = vpack.c.b16 %v426, %v424
        %v513 = vpack.c.b16 %v429, %v427
        %v514 = vpack.c.b16 %v430, %v428
        %v515 = vpack.c.b16 %v433, %v431
        %v516 = vpack.c.b16 %v434, %v432
        %v517 = vpack.c.b16 %v437, %v435
        %v518 = vpack.c.b16 %v438, %v436
        %v519 = vpack.c.b16 %v441, %v439
        %v520 = vpack.c.b16 %v442, %v440
        %v521 = vpack.c.b16 %v445, %v443
        %v522 = vpack.c.b16 %v446, %v444
        %v523 = vpack.c.b16 %v449, %v447
        %v524 = vpack.c.b16 %v450, %v448
        %v525 = vpack.c.b16 %v453, %v451
        %v526 = vpack.c.b16 %v454, %v452
        %v527 = vpack.c.b16 %v457, %v455
        %v528 = vpack.c.b16 %v458, %v456
        %v529 = vpack.c.b16 %v461, %v459
        %v530 = vpack.c.b16 %v462, %v460
        %v531 = vpack.c.b16 %v465, %v463
        %v532 = vpack.c.b16 %v466, %v464
        %v533 = vpack.c.b16 %v469, %v467
        %v534 = vpack.c.b16 %v470, %v468
        %599 = vmatprep.subr.bf16.mxu0 %v472
        %600 = vmatpush1.bf16.msra.mxu0 %v471
        %601 = vmatprep.subr.bf16.mxu0 %v474
        %602 = vmatpush1.bf16.msra.mxu0 %v473
        %603 = vmatprep.subr.bf16.mxu0 %v476
        %604 = vmatpush1.bf16.msra.mxu0 %v475
        %605 = vmatprep.subr.bf16.mxu0 %v478
        %606 = vmatpush1.bf16.msra.mxu0 %v477
        %607 = vmatprep.subr.bf16.mxu0 %v480
        %608 = vmatpush1.bf16.msra.mxu0 %v479
        %609 = vmatprep.subr.bf16.mxu0 %v482
        %610 = vmatpush1.bf16.msra.mxu0 %v481
        %611 = vmatprep.subr.bf16.mxu0 %v484
        %612 = vmatpush1.bf16.msra.mxu0 %v483
        %613 = vmatprep.subr.bf16.mxu0 %v486
        %614 = vmatpush1.bf16.msra.mxu0 %v485
        %615 = vmatprep.subr.bf16.mxu0 %v488
        %616 = vmatpush1.bf16.msra.mxu0 %v487
        %617 = vmatprep.subr.bf16.mxu0 %v490
        %618 = vmatpush1.bf16.msra.mxu0 %v489
        %619 = vmatprep.subr.bf16.mxu0 %v492
        %620 = vmatpush1.bf16.msra.mxu0 %v491
        %621 = vmatprep.subr.bf16.mxu0 %v494
        %622 = vmatpush1.bf16.msra.mxu0 %v493
        %623 = vmatprep.subr.bf16.mxu0 %v496
        %624 = vmatpush1.bf16.msra.mxu0 %v495
        %625 = vmatprep.subr.bf16.mxu0 %v498
        %626 = vmatpush1.bf16.msra.mxu0 %v497
        %627 = vmatprep.subr.bf16.mxu0 %v500
        %628 = vmatpush1.bf16.msra.mxu0 %v499
        %629 = vmatprep.subr.bf16.mxu0 %v502
        %630 = vmatpush1.bf16.msra.mxu0 %v501
        %631 = vmatprep.mubr.bf16.mxu0 %v212
        %632 = vmatmul.mubr.bf16.gmra.mrb[0].mxu0 %v211
        %v633 = vpop.f32.mrb[0].mxu0
        %v634 = vadd.f32 0.0, %v633
        %v635 = vpop.f32.mrb[0].mxu0
        %v636 = vadd.f32 0.0, %v635
        %v637 = vpop.f32.mrb[0].mxu0
        %v638 = vpop.f32.mrb[0].mxu0
        %639 = vdwg.mxu0
        %640 = vmatprep.subr.bf16.mxu0 %v504
        %641 = vmatpush1.bf16.msra.mxu0 %v503
        %642 = vmatprep.subr.bf16.mxu0 %v506
        %643 = vmatpush1.bf16.msra.mxu0 %v505
        %644 = vmatprep.subr.bf16.mxu0 %v508
        %645 = vmatpush1.bf16.msra.mxu0 %v507
        %646 = vmatprep.subr.bf16.mxu0 %v510
        %647 = vmatpush1.bf16.msra.mxu0 %v509
        %648 = vmatprep.subr.bf16.mxu0 %v512
        %649 = vmatpush1.bf16.msra.mxu0 %v511
        %650 = vmatprep.subr.bf16.mxu0 %v514
        %651 = vmatpush1.bf16.msra.mxu0 %v513
        %652 = vmatprep.subr.bf16.mxu0 %v516
        %653 = vmatpush1.bf16.msra.mxu0 %v515
        %654 = vmatprep.subr.bf16.mxu0 %v518
        %655 = vmatpush1.bf16.msra.mxu0 %v517
        %656 = vmatprep.subr.bf16.mxu0 %v520
        %657 = vmatpush1.bf16.msra.mxu0 %v519
        %658 = vmatprep.subr.bf16.mxu0 %v522
        %659 = vmatpush1.bf16.msra.mxu0 %v521
        %660 = vmatprep.subr.bf16.mxu0 %v524
        %661 = vmatpush1.bf16.msra.mxu0 %v523
        %662 = vmatprep.subr.bf16.mxu0 %v526
        %663 = vmatpush1.bf16.msra.mxu0 %v525
        %664 = vmatprep.subr.bf16.mxu0 %v528
        %665 = vmatpush1.bf16.msra.mxu0 %v527
        %666 = vmatprep.subr.bf16.mxu0 %v530
        %667 = vmatpush1.bf16.msra.mxu0 %v529
        %668 = vmatprep.subr.bf16.mxu0 %v532
        %669 = vmatpush1.bf16.msra.mxu0 %v531
        %670 = vmatprep.subr.bf16.mxu0 %v534
        %671 = vmatpush1.bf16.msra.mxu0 %v533
        %672 = vmatprep.mubr.bf16.mxu0 %v214
        %673 = vmatmul.mubr.bf16.gmra.mrb[0].mxu0 %v213
        %v674 = vpop.f32.mrb[0].mxu0
        %v675 = vadd.f32 %v634, %v674
        %v676 = vpop.f32.mrb[0].mxu0
        %v677 = vadd.f32 %v636, %v676
        %v678 = vpop.f32.mrb[0].mxu0
        %v679 = vpop.f32.mrb[0].mxu0
        %680 = vdwg.mxu0
        %v681 = vxor.u32 %v675, 2147483648
        %v682 = vxor.u32 %v677, 2147483648
        %v683 = vmul.f32 %v681, 1.442695
        %v684 = vpow.pop %v683
        %v685 = vmul.f32 %v682, 1.442695
        %v686 = vpow.pop %v685
        %v687 = vadd.f32 %v684, 1.0
        %v688 = vadd.f32 %v686, 1.0
        %v689 = vrcp.pop %v687
        %v690 = vmul.f32 1.0, %v689
        %v691 = vrcp.pop %v688
        %v692 = vmul.f32 1.0, %v691
        %v693 = vlaneseq
        %v694 = vshrl.u32 %v693, 7
        %v695 = vsub.s32 0, %v694
        %v696 = vrot.slane %v690, %v695
        %v697 = vlaneseq
        %v698 = vshrl.u32 %v697, 7
        %v699 = vsub.s32 0, %v698
        %v700 = vrot.slane %v692, %v699
        %v703 = vcombine.low %v696, %v700
        %v705 = vmul.f32 %v175, %v703
        %706 = vst [vmem:[%s174] sm:$0xff] %v705
        %s707 = sand.u32 %s75, 1
        %s708 = scalar_lea.sflag [#allocation4], %s707
        %s709 = sand.u32 %s75, 1
        %s710 = smul.addr %s709, 8
        %s711 = scalar_lea.vmem [#allocation7], %s710
        // Predicated region
        $region37: #{tpu_custom_call.1} parent=27 // pred_check
          %p712 = pneg %p85
        $region38: #{tpu_custom_call.1} parent=27 // pred_check_branch
          %714 = sbr.rel (%p712) target = $region40
        $region39: #{tpu_custom_call.1} parent=27 // pred_region
          %s716 = ssub.s32 128, 128
          %717 = vsyncadd %s708, %s716
          %s718 = smul.addr %s20, 2
          %s719 = smul.addr %s718, 64
          %s720 = scalar_lea.hbm %s2, %s719
          %s722 = sshll.u32 %s711, 4
          %s723 = int_to_ptr.vmem [resolvable:$true] %s722
          %725 = dma.vmem_to_hbm [thread:$0]  %s723, 128, %s720, %s708
        $region40: #{tpu_custom_call.1} parent=27 // pred_fallthru
          _
      $region28: #{tpu_custom_call.1} parent=5 // pred_fallthru
        _
      %p726 = scmp.le.s32.totalorder 2, %s15
      // Predicated region
      $region41: #{tpu_custom_call.1} parent=5 // pred_check
        %p727 = pneg %p726
      $region42: #{tpu_custom_call.1} parent=5 // pred_check_branch
        %729 = sbr.rel (%p727) target = $region44
      $region43: #{tpu_custom_call.1} parent=5 // pred_region
        %s730 = ssub.s32 %s15, 2
        // Predicated region
        $region45: #{tpu_custom_call.1} parent=43 // pred_check
          %p731 = pneg %p91
        $region46: #{tpu_custom_call.1} parent=43 // pred_check_branch
          %733 = sbr.rel (%p731) target = $region48
        $region47: #{tpu_custom_call.1} parent=43 // pred_region
          %s734 = sand.u32 %s76, 1
          %s735 = scalar_lea.sflag [#allocation4], %s734
          %s736 = sand.u32 %s76, 1
          %s737 = smul.addr %s736, 8
          %s738 = scalar_lea.vmem [#allocation7], %s737
          %739 = dma.done %s735, 128
        $region48: #{tpu_custom_call.1} parent=43 // pred_fallthru
          _
      $region44: #{tpu_custom_call.1} parent=5 // pred_fallthru
        _
    $region6: #{tpu_custom_call.1} parent=1 // loop_footer
      %s19 = sadd.s32 1, %s15
    $region7: #{tpu_custom_call.1} parent=1 // loop_footer_branch
      %14 = sbr.rel target = $region3
    $region8: #{tpu_custom_call.1} parent=1 // loop_exit
      _
    %740 = vsyncpa [#allocation3], 1
    %s741 = scalar_lea.sflag [#allocation3], 1
    %742 = vsyncpa %s741, 1
    %743 = vsyncpa [#allocation6], 1
    %744 = vsyncpa [#allocation4], 1
    %s745 = scalar_lea.sflag [#allocation4], 1
    %746 = vsyncpa %s745, 1

// kernel: tpu_custom_call.1
$region0: #{tpu_custom_call.1}
  #allocation0 [shape = 'u32[]', space=smem, size = 0x4, offset = 0x4, fixed_abs, tag = 'smem constant byte address 0x4 - core index']
  #allocation1 [shape = 'u32[144,128]{1,0:T(1,128)}', space=vmem, size = 0x12000, scoped, tag = 'internal scratch']
  %s0 = inlined_call_operand.hbm [shape: f32[2,4,256], index: 0, kind: input, shape index: {}]
  %s1 = inlined_call_operand.hbm [shape: bf16[512,256], index: 1, kind: input, shape index: {}]
  %s2 = inlined_call_operand.hbm [shape: f32[2,4,256], index: 2, kind: output, shape index: {}]
  %s3 = sld [smem:[#allocation0]]
  $region49: #{tpu_custom_call.1} parent=0
    _
  %s5 = ssub.s32 1, %s3
  %s6 = scalar_select 0, %s5, %s3
  $region1: #{tpu_custom_call.1} parent=0
    #allocation2 [shape = 'u8[8192]{0}', space=vmem, size = 0x2000, scoped, tag = 'input window, operand 0']
    #allocation3 [shape = 's32[2]{0}', space=sflag, size = 0x8, scoped, tag = 'scoped memory for tpu_custom_call.1']
    #allocation4 [shape = 's32[2]{0}', space=sflag, size = 0x8, scoped, tag = 'scoped memory for tpu_custom_call.1']
    #allocation5 [shape = 'u8[262144]{0}', space=vmem, size = 0x40000, scoped, tag = 'input window, operand 1, single buffered']
    #allocation6 [shape = 's32[1]{0}', space=sflag, size = 0x4, scoped, tag = 'scoped memory for tpu_custom_call.1']
    #allocation7 [shape = 'u8[8192]{0}', space=vmem, size = 0x2000, scoped, tag = 'output window, operand 0']
    %7 = vsyncpa [#allocation3], 0
    %s8 = scalar_lea.sflag [#allocation3], 1
    %9 = vsyncpa %s8, 0
    %10 = vsyncpa [#allocation6], 0
    %11 = vsyncpa [#allocation4], 0
    %s12 = scalar_lea.sflag [#allocation4], 1
    %13 = vsyncpa %s12, 0
    loop: start=0, step=1, limit=4
    $region2: #{tpu_custom_call.1} parent=1 // loop_pre_header
      _
    $region3: #{tpu_custom_call.1} parent=1 // loop_header
      %s15 = sphi 0, %s19
      %p16 = scmp.ge.s32.totalorder %s15, 4
      %s25 = sphi 0, %s27
      %s28 = sphi 0, %s25
      %s29 = sphi 0, %s28
      %s45 = sphi 0, %s29
      %s49 = sphi 0, %s49
      %s51 = sphi 0, %s49
      %s52 = sphi 0, %s51
      %s66 = sphi 0, %s52
      %s72 = sphi 0, %s74
      %s75 = sphi 0, %s72
      %s76 = sphi 0, %s75
      %s92 = sphi 0, %s76
    $region4: #{tpu_custom_call.1} parent=1 // loop_header_branch
      %18 = sbr.rel (%p16) target = $region8
    $region5: #{tpu_custom_call.1} parent=1 // loop_body
      %s20 = ssub.s32 %s15, 1
      %s21 = ssub.s32 %s15, 2
      %s22 = sadd.s32 %s15, 1
      %s23 = ssub.s32 %s15, %s22
      %p24 = scmp.eq.s32.totalorder %s23, 0
      %s26 = sadd.s32 %s25, 1
      %s27 = scalar_select %p24, %s25, %s26
      %p30 = pneg %p24
      %p31 = scmp.eq.s32.totalorder %s15, 1
      %p32 = por %p30, %p31
      %p33 = scmp.ne.s32.totalorder %s25, %s28
      %p34 = scmp.eq.s32.totalorder %s15, 0
      %p35 = por %p33, %p34
      %p36 = scmp.ne.s32.totalorder %s25, %s28
      %p37 = scmp.eq.s32.totalorder %s20, 1
      %p38 = por %p36, %p37
      %p39 = scmp.ne.s32.totalorder %s28, %s29
      %p40 = scmp.eq.s32.totalorder %s20, 0
      %p41 = por %p39, %p40
      %p42 = scmp.ne.s32.totalorder %s28, %s29
      %p43 = scmp.eq.s32.totalorder %s21, 1
      %p44 = por %p42, %p43
      %p46 = scmp.ne.s32.totalorder %s29, %s45
      %p47 = scmp.eq.s32.totalorder %s21, 0
      %p48 = por %p46, %p47
      %s50 = sadd.s32 %s49, 1
      %p53 = scmp.eq.s32.totalorder %s15, 1
      %p54 = scmp.ne.s32.totalorder %s49, %s51
      %p55 = scmp.eq.s32.totalorder %s15, 0
      %p56 = por %p54, %p55
      %p57 = scmp.ne.s32.totalorder %s49, %s51
      %p58 = scmp.eq.s32.totalorder %s20, 1
      %p59 = por %p57, %p58
      %p60 = scmp.ne.s32.totalorder %s51, %s52
      %p61 = scmp.eq.s32.totalorder %s20, 0
      %p62 = por %p60, %p61
      %p63 = scmp.ne.s32.totalorder %s51, %s52
      %p64 = scmp.eq.s32.totalorder %s21, 1
      %p65 = por %p63, %p64
      %p67 = scmp.ne.s32.totalorder %s52, %s66
      %p68 = scmp.eq.s32.totalorder %s21, 0
      %p69 = por %p67, %p68
      %s70 = ssub.s32 %s15, %s22
      %p71 = scmp.eq.s32.totalorder %s70, 0
      %s73 = sadd.s32 %s72, 1
      %s74 = scalar_select %p71, %s72, %s73
      %p77 = pneg %p71
      %p78 = scmp.eq.s32.totalorder %s15, 1
      %p79 = por %p77, %p78
      %p80 = scmp.ne.s32.totalorder %s72, %s75
      %p81 = scmp.eq.s32.totalorder %s15, 0
      %p82 = por %p80, %p81
      %p83 = scmp.ne.s32.totalorder %s72, %s75
      %p84 = scmp.eq.s32.totalorder %s20, 1
      %p85 = por %p83, %p84
      %p86 = scmp.ne.s32.totalorder %s75, %s76
      %p87 = scmp.eq.s32.totalorder %s20, 0
      %p88 = por %p86, %p87
      %p89 = scmp.ne.s32.totalorder %s75, %s76
      %p90 = scmp.eq.s32.totalorder %s21, 1
      %p91 = por %p89, %p90
      %p93 = scmp.ne.s32.totalorder %s76, %s92
      %p94 = scmp.eq.s32.totalorder %s21, 0
      %p95 = por %p93, %p94
      %p96 = scmp.le.s32.totalorder 1, %s15
      %p97 = scmp.lt.s32.totalorder %s15, 3
      %p98 = pnand %p96, %p97
      %p99 = pneg %p98
      // Predicated region
      $region9: #{tpu_custom_call.1} parent=5 // pred_check
        _
      $region10: #{tpu_custom_call.1} parent=5 // pred_check_branch
        %101 = sbr.rel (%p98) target = $region12
      $region11: #{tpu_custom_call.1} parent=5 // pred_region
        %s102 = ssub.s32 %s15, 1
        // Predicated region
        $region13: #{tpu_custom_call.1} parent=11 // pred_check
          %p103 = pneg %p62
        $region14: #{tpu_custom_call.1} parent=11 // pred_check_branch
          %105 = sbr.rel (%p103) target = $region16
        $region15: #{tpu_custom_call.1} parent=11 // pred_region
          %s107 = ssub.s32 8192, 8192
          %108 = vsyncadd [#allocation6], %s107
          %s109 = sshll.u32 [#allocation5], 4
          %s110 = int_to_ptr.vmem [resolvable:$true] %s109
          %115 = dma.hbm_to_vmem [thread:$0]  %s1, 8192, %s110, [#allocation6], 128, 128, 8
        $region16: #{tpu_custom_call.1} parent=11 // pred_fallthru
          _
      $region12: #{tpu_custom_call.1} parent=5 // pred_fallthru
        _
      %p116 = scmp.lt.s32.totalorder %s15, 2
      // Predicated region
      $region17: #{tpu_custom_call.1} parent=5 // pred_check
        %p117 = pneg %p116
      $region18: #{tpu_custom_call.1} parent=5 // pred_check_branch
        %119 = sbr.rel (%p117) target = $region20
      $region19: #{tpu_custom_call.1} parent=5 // pred_region
        // Predicated region
        $region21: #{tpu_custom_call.1} parent=19 // pred_check
          %p120 = pneg %p35
        $region22: #{tpu_custom_call.1} parent=19 // pred_check_branch
          %122 = sbr.rel (%p120) target = $region24
        $region23: #{tpu_custom_call.1} parent=19 // pred_region
          %s123 = sand.u32 %s25, 1
          %s124 = scalar_lea.sflag [#allocation3], %s123
          %s125 = sand.u32 %s25, 1
          %s126 = smul.addr %s125, 8
          %s127 = scalar_lea.vmem [#allocation2], %s126
          %s129 = ssub.s32 128, 128
          %130 = vsyncadd %s124, %s129
          %s131 = smul.addr %s15, 2
          %s132 = smul.addr %s131, 64
          %s133 = scalar_lea.hbm %s0, %s132
          %s135 = sshll.u32 %s127, 4
          %s136 = int_to_ptr.vmem [resolvable:$true] %s135
          %138 = dma.hbm_to_vmem [thread:$0]  %s133, 128, %s136, %s124
        $region24: #{tpu_custom_call.1} parent=19 // pred_fallthru
          _
      $region20: #{tpu_custom_call.1} parent=5 // pred_fallthru
        _
      %p139 = scmp.le.s32.totalorder 1, %s15
      %p140 = scmp.lt.s32.totalorder %s15, 3
      %p141 = pnand %p139, %p140
      %p142 = pneg %p141
      // Predicated region
      $region25: #{tpu_custom_call.1} parent=5 // pred_check
        _
      $region26: #{tpu_custom_call.1} parent=5 // pred_check_branch
        %144 = sbr.rel (%p141) target = $region28
      $region27: #{tpu_custom_call.1} parent=5 // pred_region
        %s145 = ssub.s32 %s15, 1
        %s146 = sand.u32 %s28, 1
        %s147 = scalar_lea.sflag [#allocation3], %s146
        %s148 = sand.u32 %s28, 1
        %s149 = smul.addr %s148, 8
        %s150 = scalar_lea.vmem [#allocation2], %s149
        // Predicated region
        $region29: #{tpu_custom_call.1} parent=27 // pred_check
          %p151 = pneg %p41
        $region30: #{tpu_custom_call.1} parent=27 // pred_check_branch
          %153 = sbr.rel (%p151) target = $region32
        $region31: #{tpu_custom_call.1} parent=27 // pred_region
          %154 = dma.done %s147, 128
        $region32: #{tpu_custom_call.1} parent=27 // pred_fallthru
          _
        // Predicated region
        $region33: #{tpu_custom_call.1} parent=27 // pred_check
          %p155 = pneg %p62
        $region34: #{tpu_custom_call.1} parent=27 // pred_check_branch
          %157 = sbr.rel (%p155) target = $region36
        $region35: #{tpu_custom_call.1} parent=27 // pred_region
          %158 = dma.done [#allocation6], 8192
        $region36: #{tpu_custom_call.1} parent=27 // pred_fallthru
          _
        %s159 = sand.u32 %s28, 1
        %s160 = scalar_lea.sflag [#allocation3], %s159
        %s161 = sand.u32 %s28, 1
        %s162 = smul.addr %s161, 8
        %s163 = scalar_lea.vmem [#allocation2], %s162
        %p164 = pneg %p41
        %p165 = pneg %p38
        %p166 = pneg %p62
        %p167 = pneg %p59
        %p168 = pneg %p88
        %p169 = pneg %p85
        %s170 = sand.u32 %s75, 1
        %s171 = scalar_lea.sflag [#allocation4], %s170
        %s172 = sand.u32 %s75, 1
        %s173 = smul.addr %s172, 8
        %s174 = scalar_lea.vmem [#allocation7], %s173
        %v175 = vld [vmem:[%s150] sm:$0xff]
        %v177 = vcombine.high %v175, %v175
        %vm179 = vcmask 1043456
        %v180 = vsel %vm179, %v175, 0.0
        %v181 = vrot.slane %v180, 4
        %v182 = vadd.f32 %v180, %v181
        %v183 = vrot.slane %v182, 2
        %v184 = vadd.f32 %v182, %v183
        %v185 = vrot.slane %v184, 1
        %v186 = vadd.f32 %v184, %v185
        %v187 = vsel %vm179, %v177, 0.0
        %v188 = vrot.slane %v187, 4
        %v189 = vadd.f32 %v187, %v188
        %v190 = vrot.slane %v189, 2
        %v191 = vadd.f32 %v189, %v190
        %v192 = vrot.slane %v191, 1
        %v193 = vadd.f32 %v191, %v192
        %v194 = vrcp.pop 4.0
        %v195 = vmul.f32 %v186, %v194
        %v196 = vmul.f32 %v193, %v194
        %v197 = vsel %vm179, %v175, -inf
        %v198 = vrot.slane %v197, 4
        %v199 = vmax.f32 %v197, %v198
        %v200 = vrot.slane %v199, 2
        %v201 = vmax.f32 %v199, %v200
        %v202 = vrot.slane %v201, 1
        %v203 = vmax.f32 %v201, %v202
        %v204 = vsel %vm179, %v177, -inf
        %v205 = vrot.slane %v204, 4
        %v206 = vmax.f32 %v204, %v205
        %v207 = vrot.slane %v206, 2
        %v208 = vmax.f32 %v206, %v207
        %v209 = vrot.slane %v208, 1
        %v210 = vmax.f32 %v208, %v209
        %v211 = vpack.c.bf16 %v195, %v195
        %v212 = vpack.c.bf16 %v196, %v196
        %v213 = vpack.c.bf16 %v203, %v203
        %v214 = vpack.c.bf16 %v210, %v210
        %v215 = vld [vmem:[#allocation5] sm:$0xff]
        %v216 = vld [vmem:[#allocation5 + $0x8] sm:$0xff]
        %v217 = vld [vmem:[#allocation5 + $0x10] sm:$0xff]
        %v218 = vld [vmem:[#allocation5 + $0x18] sm:$0xff]
        %v219 = vld [vmem:[#allocation5 + $0x20] sm:$0xff]
        %v220 = vld [vmem:[#allocation5 + $0x28] sm:$0xff]
        %v221 = vld [vmem:[#allocation5 + $0x30] sm:$0xff]
        %v222 = vld [vmem:[#allocation5 + $0x38] sm:$0xff]
        %v223 = vld [vmem:[#allocation5 + $0x40] sm:$0xff]
        %v224 = vld [vmem:[#allocation5 + $0x48] sm:$0xff]
        %v225 = vld [vmem:[#allocation5 + $0x50] sm:$0xff]
        %v226 = vld [vmem:[#allocation5 + $0x58] sm:$0xff]
        %v227 = vld [vmem:[#allocation5 + $0x60] sm:$0xff]
        %v228 = vld [vmem:[#allocation5 + $0x68] sm:$0xff]
        %v229 = vld [vmem:[#allocation5 + $0x70] sm:$0xff]
        %v230 = vld [vmem:[#allocation5 + $0x78] sm:$0xff]
        %v231 = vld [vmem:[#allocation5 + $0x80] sm:$0xff]
        %v232 = vld [vmem:[#allocation5 + $0x88] sm:$0xff]
        %v233 = vld [vmem:[#allocation5 + $0x90] sm:$0xff]
        %v234 = vld [vmem:[#allocation5 + $0x98] sm:$0xff]
        %v235 = vld [vmem:[#allocation5 + $0xa0] sm:$0xff]
        %v236 = vld [vmem:[#allocation5 + $0xa8] sm:$0xff]
        %v237 = vld [vmem:[#allocation5 + $0xb0] sm:$0xff]
        %v238 = vld [vmem:[#allocation5 + $0xb8] sm:$0xff]
        %v239 = vld [vmem:[#allocation5 + $0xc0] sm:$0xff]
        %v240 = vld [vmem:[#allocation5 + $0xc8] sm:$0xff]
        %v241 = vld [vmem:[#allocation5 + $0xd0] sm:$0xff]
        %v242 = vld [vmem:[#allocation5 + $0xd8] sm:$0xff]
        %v243 = vld [vmem:[#allocation5 + $0xe0] sm:$0xff]
        %v244 = vld [vmem:[#allocation5 + $0xe8] sm:$0xff]
        %v245 = vld [vmem:[#allocation5 + $0xf0] sm:$0xff]
        %v246 = vld [vmem:[#allocation5 + $0xf8] sm:$0xff]
        %v247 = vld [vmem:[#allocation5 + $0x100] sm:$0xff]
        %v248 = vld [vmem:[#allocation5 + $0x108] sm:$0xff]
        %v249 = vld [vmem:[#allocation5 + $0x110] sm:$0xff]
        %v250 = vld [vmem:[#allocation5 + $0x118] sm:$0xff]
        %v251 = vld [vmem:[#allocation5 + $0x120] sm:$0xff]
        %v252 = vld [vmem:[#allocation5 + $0x128] sm:$0xff]
        %v253 = vld [vmem:[#allocation5 + $0x130] sm:$0xff]
        %v254 = vld [vmem:[#allocation5 + $0x138] sm:$0xff]
        %v255 = vld [vmem:[#allocation5 + $0x140] sm:$0xff]
        %v256 = vld [vmem:[#allocation5 + $0x148] sm:$0xff]
        %v257 = vld [vmem:[#allocation5 + $0x150] sm:$0xff]
        %v258 = vld [vmem:[#allocation5 + $0x158] sm:$0xff]
        %v259 = vld [vmem:[#allocation5 + $0x160] sm:$0xff]
        %v260 = vld [vmem:[#allocation5 + $0x168] sm:$0xff]
        %v261 = vld [vmem:[#allocation5 + $0x170] sm:$0xff]
        %v262 = vld [vmem:[#allocation5 + $0x178] sm:$0xff]
        %v263 = vld [vmem:[#allocation5 + $0x180] sm:$0xff]
        %v264 = vld [vmem:[#allocation5 + $0x188] sm:$0xff]
        %v265 = vld [vmem:[#allocation5 + $0x190] sm:$0xff]
        %v266 = vld [vmem:[#allocation5 + $0x198] sm:$0xff]
        %v267 = vld [vmem:[#allocation5 + $0x1a0] sm:$0xff]
        %v268 = vld [vmem:[#allocation5 + $0x1a8] sm:$0xff]
        %v269 = vld [vmem:[#allocation5 + $0x1b0] sm:$0xff]
        %v270 = vld [vmem:[#allocation5 + $0x1b8] sm:$0xff]
        %v271 = vld [vmem:[#allocation5 + $0x1c0] sm:$0xff]
        %v272 = vld [vmem:[#allocation5 + $0x1c8] sm:$0xff]
        %v273 = vld [vmem:[#allocation5 + $0x1d0] sm:$0xff]
        %v274 = vld [vmem:[#allocation5 + $0x1d8] sm:$0xff]
        %v275 = vld [vmem:[#allocation5 + $0x1e0] sm:$0xff]
        %v276 = vld [vmem:[#allocation5 + $0x1e8] sm:$0xff]
        %v277 = vld [vmem:[#allocation5 + $0x1f0] sm:$0xff]
        %v278 = vld [vmem:[#allocation5 + $0x1f8] sm:$0xff]
        %v343 = vunpack.c.l.b16 %v215
        %v344 = vunpack.c.h.b16 %v215
        %v345 = vunpack.c.l.b16 %v216
        %v346 = vunpack.c.h.b16 %v216
        %v347 = vunpack.c.l.b16 %v217
        %v348 = vunpack.c.h.b16 %v217
        %v349 = vunpack.c.l.b16 %v218
        %v350 = vunpack.c.h.b16 %v218
        %v351 = vunpack.c.l.b16 %v219
        %v352 = vunpack.c.h.b16 %v219
        %v353 = vunpack.c.l.b16 %v220
        %v354 = vunpack.c.h.b16 %v220
        %v355 = vunpack.c.l.b16 %v221
        %v356 = vunpack.c.h.b16 %v221
        %v357 = vunpack.c.l.b16 %v222
        %v358 = vunpack.c.h.b16 %v222
        %v359 = vunpack.c.l.b16 %v223
        %v360 = vunpack.c.h.b16 %v223
        %v361 = vunpack.c.l.b16 %v224
        %v362 = vunpack.c.h.b16 %v224
        %v363 = vunpack.c.l.b16 %v225
        %v364 = vunpack.c.h.b16 %v225
        %v365 = vunpack.c.l.b16 %v226
        %v366 = vunpack.c.h.b16 %v226
        %v367 = vunpack.c.l.b16 %v227
        %v368 = vunpack.c.h.b16 %v227
        %v369 = vunpack.c.l.b16 %v228
        %v370 = vunpack.c.h.b16 %v228
        %v371 = vunpack.c.l.b16 %v229
        %v372 = vunpack.c.h.b16 %v229
        %v373 = vunpack.c.l.b16 %v230
        %v374 = vunpack.c.h.b16 %v230
        %v375 = vunpack.c.l.b16 %v231
        %v376 = vunpack.c.h.b16 %v231
        %v377 = vunpack.c.l.b16 %v232
        %v378 = vunpack.c.h.b16 %v232
        %v379 = vunpack.c.l.b16 %v233
        %v380 = vunpack.c.h.b16 %v233
        %v381 = vunpack.c.l.b16 %v234
        %v382 = vunpack.c.h.b16 %v234
        %v383 = vunpack.c.l.b16 %v235
        %v384 = vunpack.c.h.b16 %v235
        %v385 = vunpack.c.l.b16 %v236
        %v386 = vunpack.c.h.b16 %v236
        %v387 = vunpack.c.l.b16 %v237
        %v388 = vunpack.c.h.b16 %v237
        %v389 = vunpack.c.l.b16 %v238
        %v390 = vunpack.c.h.b16 %v238
        %v391 = vunpack.c.l.b16 %v239
        %v392 = vunpack.c.h.b16 %v239
        %v393 = vunpack.c.l.b16 %v240
        %v394 = vunpack.c.h.b16 %v240
        %v395 = vunpack.c.l.b16 %v241
        %v396 = vunpack.c.h.b16 %v241
        %v397 = vunpack.c.l.b16 %v242
        %v398 = vunpack.c.h.b16 %v242
        %v399 = vunpack.c.l.b16 %v243
        %v400 = vunpack.c.h.b16 %v243
        %v401 = vunpack.c.l.b16 %v244
        %v402 = vunpack.c.h.b16 %v244
        %v403 = vunpack.c.l.b16 %v245
        %v404 = vunpack.c.h.b16 %v245
        %v405 = vunpack.c.l.b16 %v246
        %v406 = vunpack.c.h.b16 %v246
        %v407 = vunpack.c.l.b16 %v247
        %v408 = vunpack.c.h.b16 %v247
        %v409 = vunpack.c.l.b16 %v248
        %v410 = vunpack.c.h.b16 %v248
        %v411 = vunpack.c.l.b16 %v249
        %v412 = vunpack.c.h.b16 %v249
        %v413 = vunpack.c.l.b16 %v250
        %v414 = vunpack.c.h.b16 %v250
        %v415 = vunpack.c.l.b16 %v251
        %v416 = vunpack.c.h.b16 %v251
        %v417 = vunpack.c.l.b16 %v252
        %v418 = vunpack.c.h.b16 %v252
        %v419 = vunpack.c.l.b16 %v253
        %v420 = vunpack.c.h.b16 %v253
        %v421 = vunpack.c.l.b16 %v254
        %v422 = vunpack.c.h.b16 %v254
        %v423 = vunpack.c.l.b16 %v255
        %v424 = vunpack.c.h.b16 %v255
        %v425 = vunpack.c.l.b16 %v256
        %v426 = vunpack.c.h.b16 %v256
        %v427 = vunpack.c.l.b16 %v257
        %v428 = vunpack.c.h.b16 %v257
        %v429 = vunpack.c.l.b16 %v258
        %v430 = vunpack.c.h.b16 %v258
        %v431 = vunpack.c.l.b16 %v259
        %v432 = vunpack.c.h.b16 %v259
        %v433 = vunpack.c.l.b16 %v260
        %v434 = vunpack.c.h.b16 %v260
        %v435 = vunpack.c.l.b16 %v261
        %v436 = vunpack.c.h.b16 %v261
        %v437 = vunpack.c.l.b16 %v262
        %v438 = vunpack.c.h.b16 %v262
        %v439 = vunpack.c.l.b16 %v263
        %v440 = vunpack.c.h.b16 %v263
        %v441 = vunpack.c.l.b16 %v264
        %v442 = vunpack.c.h.b16 %v264
        %v443 = vunpack.c.l.b16 %v265
        %v444 = vunpack.c.h.b16 %v265
        %v445 = vunpack.c.l.b16 %v266
        %v446 = vunpack.c.h.b16 %v266
        %v447 = vunpack.c.l.b16 %v267
        %v448 = vunpack.c.h.b16 %v267
        %v449 = vunpack.c.l.b16 %v268
        %v450 = vunpack.c.h.b16 %v268
        %v451 = vunpack.c.l.b16 %v269
        %v452 = vunpack.c.h.b16 %v269
        %v453 = vunpack.c.l.b16 %v270
        %v454 = vunpack.c.h.b16 %v270
        %v455 = vunpack.c.l.b16 %v271
        %v456 = vunpack.c.h.b16 %v271
        %v457 = vunpack.c.l.b16 %v272
        %v458 = vunpack.c.h.b16 %v272
        %v459 = vunpack.c.l.b16 %v273
        %v460 = vunpack.c.h.b16 %v273
        %v461 = vunpack.c.l.b16 %v274
        %v462 = vunpack.c.h.b16 %v274
        %v463 = vunpack.c.l.b16 %v275
        %v464 = vunpack.c.h.b16 %v275
        %v465 = vunpack.c.l.b16 %v276
        %v466 = vunpack.c.h.b16 %v276
        %v467 = vunpack.c.l.b16 %v277
        %v468 = vunpack.c.h.b16 %v277
        %v469 = vunpack.c.l.b16 %v278
        %v470 = vunpack.c.h.b16 %v278
        %v471 = vpack.c.b16 %v345, %v343
        %v472 = vpack.c.b16 %v346, %v344
        %v473 = vpack.c.b16 %v349, %v347
        %v474 = vpack.c.b16 %v350, %v348
        %v475 = vpack.c.b16 %v353, %v351
        %v476 = vpack.c.b16 %v354, %v352
        %v477 = vpack.c.b16 %v357, %v355
        %v478 = vpack.c.b16 %v358, %v356
        %v479 = vpack.c.b16 %v361, %v359
        %v480 = vpack.c.b16 %v362, %v360
        %v481 = vpack.c.b16 %v365, %v363
        %v482 = vpack.c.b16 %v366, %v364
        %v483 = vpack.c.b16 %v369, %v367
        %v484 = vpack.c.b16 %v370, %v368
        %v485 = vpack.c.b16 %v373, %v371
        %v486 = vpack.c.b16 %v374, %v372
        %v487 = vpack.c.b16 %v377, %v375
        %v488 = vpack.c.b16 %v378, %v376
        %v489 = vpack.c.b16 %v381, %v379
        %v490 = vpack.c.b16 %v382, %v380
        %v491 = vpack.c.b16 %v385, %v383
        %v492 = vpack.c.b16 %v386, %v384
        %v493 = vpack.c.b16 %v389, %v387
        %v494 = vpack.c.b16 %v390, %v388
        %v495 = vpack.c.b16 %v393, %v391
        %v496 = vpack.c.b16 %v394, %v392
        %v497 = vpack.c.b16 %v397, %v395
        %v498 = vpack.c.b16 %v398, %v396
        %v499 = vpack.c.b16 %v401, %v399
        %v500 = vpack.c.b16 %v402, %v400
        %v501 = vpack.c.b16 %v405, %v403
        %v502 = vpack.c.b16 %v406, %v404
        %v503 = vpack.c.b16 %v409, %v407
        %v504 = vpack.c.b16 %v410, %v408
        %v505 = vpack.c.b16 %v413, %v411
        %v506 = vpack.c.b16 %v414, %v412
        %v507 = vpack.c.b16 %v417, %v415
        %v508 = vpack.c.b16 %v418, %v416
        %v509 = vpack.c.b16 %v421, %v419
        %v510 = vpack.c.b16 %v422, %v420
        %v511 = vpack.c.b16 %v425, %v423
        %v512 = vpack.c.b16 %v426, %v424
        %v513 = vpack.c.b16 %v429, %v427
        %v514 = vpack.c.b16 %v430, %v428
        %v515 = vpack.c.b16 %v433, %v431
        %v516 = vpack.c.b16 %v434, %v432
        %v517 = vpack.c.b16 %v437, %v435
        %v518 = vpack.c.b16 %v438, %v436
        %v519 = vpack.c.b16 %v441, %v439
        %v520 = vpack.c.b16 %v442, %v440
        %v521 = vpack.c.b16 %v445, %v443
        %v522 = vpack.c.b16 %v446, %v444
        %v523 = vpack.c.b16 %v449, %v447
        %v524 = vpack.c.b16 %v450, %v448
        %v525 = vpack.c.b16 %v453, %v451
        %v526 = vpack.c.b16 %v454, %v452
        %v527 = vpack.c.b16 %v457, %v455
        %v528 = vpack.c.b16 %v458, %v456
        %v529 = vpack.c.b16 %v461, %v459
        %v530 = vpack.c.b16 %v462, %v460
        %v531 = vpack.c.b16 %v465, %v463
        %v532 = vpack.c.b16 %v466, %v464
        %v533 = vpack.c.b16 %v469, %v467
        %v534 = vpack.c.b16 %v470, %v468
        %599 = vmatprep.subr.bf16.mxu0 %v472
        %600 = vmatpush1.bf16.msra.mxu0 %v471
        %601 = vmatprep.subr.bf16.mxu0 %v474
        %602 = vmatpush1.bf16.msra.mxu0 %v473
        %603 = vmatprep.subr.bf16.mxu0 %v476
        %604 = vmatpush1.bf16.msra.mxu0 %v475
        %605 = vmatprep.subr.bf16.mxu0 %v478
        %606 = vmatpush1.bf16.msra.mxu0 %v477
        %607 = vmatprep.subr.bf16.mxu0 %v480
        %608 = vmatpush1.bf16.msra.mxu0 %v479
        %609 = vmatprep.subr.bf16.mxu0 %v482
        %610 = vmatpush1.bf16.msra.mxu0 %v481
        %611 = vmatprep.subr.bf16.mxu0 %v484
        %612 = vmatpush1.bf16.msra.mxu0 %v483
        %613 = vmatprep.subr.bf16.mxu0 %v486
        %614 = vmatpush1.bf16.msra.mxu0 %v485
        %615 = vmatprep.subr.bf16.mxu0 %v488
        %616 = vmatpush1.bf16.msra.mxu0 %v487
        %617 = vmatprep.subr.bf16.mxu0 %v490
        %618 = vmatpush1.bf16.msra.mxu0 %v489
        %619 = vmatprep.subr.bf16.mxu0 %v492
        %620 = vmatpush1.bf16.msra.mxu0 %v491
        %621 = vmatprep.subr.bf16.mxu0 %v494
        %622 = vmatpush1.bf16.msra.mxu0 %v493
        %623 = vmatprep.subr.bf16.mxu0 %v496
        %624 = vmatpush1.bf16.msra.mxu0 %v495
        %625 = vmatprep.subr.bf16.mxu0 %v498
        %626 = vmatpush1.bf16.msra.mxu0 %v497
        %627 = vmatprep.subr.bf16.mxu0 %v500
        %628 = vmatpush1.bf16.msra.mxu0 %v499
        %629 = vmatprep.subr.bf16.mxu0 %v502
        %630 = vmatpush1.bf16.msra.mxu0 %v501
        %631 = vmatprep.mubr.bf16.mxu0 %v212
        %632 = vmatmul.mubr.bf16.gmra.mrb[0].mxu0 %v211
        %v633 = vpop.f32.mrb[0].mxu0
        %v634 = vadd.f32 0.0, %v633
        %v635 = vpop.f32.mrb[0].mxu0
        %v636 = vadd.f32 0.0, %v635
        %v637 = vpop.f32.mrb[0].mxu0
        %v638 = vpop.f32.mrb[0].mxu0
        %639 = vdwg.mxu0
        %640 = vmatprep.subr.bf16.mxu0 %v504
        %641 = vmatpush1.bf16.msra.mxu0 %v503
        %642 = vmatprep.subr.bf16.mxu0 %v506
        %643 = vmatpush1.bf16.msra.mxu0 %v505
        %644 = vmatprep.subr.bf16.mxu0 %v508
        %645 = vmatpush1.bf16.msra.mxu0 %v507
        %646 = vmatprep.subr.bf16.mxu0 %v510
        %647 = vmatpush1.bf16.msra.mxu0 %v509
        %648 = vmatprep.subr.bf16.mxu0 %v512
        %649 = vmatpush1.bf16.msra.mxu0 %v511
        %650 = vmatprep.subr.bf16.mxu0 %v514
        %651 = vmatpush1.bf16.msra.mxu0 %v513
        %652 = vmatprep.subr.bf16.mxu0 %v516
        %653 = vmatpush1.bf16.msra.mxu0 %v515
        %654 = vmatprep.subr.bf16.mxu0 %v518
        %655 = vmatpush1.bf16.msra.mxu0 %v517
        %656 = vmatprep.subr.bf16.mxu0 %v520
        %657 = vmatpush1.bf16.msra.mxu0 %v519
        %658 = vmatprep.subr.bf16.mxu0 %v522
        %659 = vmatpush1.bf16.msra.mxu0 %v521
        %660 = vmatprep.subr.bf16.mxu0 %v524
        %661 = vmatpush1.bf16.msra.mxu0 %v523
        %662 = vmatprep.subr.bf16.mxu0 %v526
        %663 = vmatpush1.bf16.msra.mxu0 %v525
        %664 = vmatprep.subr.bf16.mxu0 %v528
        %665 = vmatpush1.bf16.msra.mxu0 %v527
        %666 = vmatprep.subr.bf16.mxu0 %v530
        %667 = vmatpush1.bf16.msra.mxu0 %v529
        %668 = vmatprep.subr.bf16.mxu0 %v532
        %669 = vmatpush1.bf16.msra.mxu0 %v531
        %670 = vmatprep.subr.bf16.mxu0 %v534
        %671 = vmatpush1.bf16.msra.mxu0 %v533
        %672 = vmatprep.mubr.bf16.mxu0 %v214
        %673 = vmatmul.mubr.bf16.gmra.mrb[0].mxu0 %v213
        %v674 = vpop.f32.mrb[0].mxu0
        %v675 = vadd.f32 %v634, %v674
        %v676 = vpop.f32.mrb[0].mxu0
        %v677 = vadd.f32 %v636, %v676
        %v678 = vpop.f32.mrb[0].mxu0
        %v679 = vpop.f32.mrb[0].mxu0
        %680 = vdwg.mxu0
        %v681 = vxor.u32 %v675, 2147483648
        %v682 = vxor.u32 %v677, 2147483648
        %v683 = vmul.f32 %v681, 1.442695
        %v684 = vpow.pop %v683
        %v685 = vmul.f32 %v682, 1.442695
        %v686 = vpow.pop %v685
        %v687 = vadd.f32 %v684, 1.0
        %v688 = vadd.f32 %v686, 1.0
        %v689 = vrcp.pop %v687
        %v690 = vmul.f32 1.0, %v689
        %v691 = vrcp.pop %v688
        %v692 = vmul.f32 1.0, %v691
        %v693 = vlaneseq
        %v694 = vshrl.u32 %v693, 7
        %v695 = vsub.s32 0, %v694
        %v696 = vrot.slane %v690, %v695
        %v697 = vlaneseq
        %v698 = vshrl.u32 %v697, 7
        %v699 = vsub.s32 0, %v698
        %v700 = vrot.slane %v692, %v699
        %v703 = vcombine.low %v696, %v700
        %v705 = vmul.f32 %v175, %v703
        %706 = vst [vmem:[%s174] sm:$0xff] %v705
        %s707 = sand.u32 %s75, 1
        %s708 = scalar_lea.sflag [#allocation4], %s707
        %s709 = sand.u32 %s75, 1
        %s710 = smul.addr %s709, 8
        %s711 = scalar_lea.vmem [#allocation7], %s710
        // Predicated region
        $region37: #{tpu_custom_call.1} parent=27 // pred_check
          %p712 = pneg %p85
        $region38: #{tpu_custom_call.1} parent=27 // pred_check_branch
          %714 = sbr.rel (%p712) target = $region40
        $region39: #{tpu_custom_call.1} parent=27 // pred_region
          %s716 = ssub.s32 128, 128
          %717 = vsyncadd %s708, %s716
          %s718 = smul.addr %s20, 2
          %s719 = smul.addr %s718, 64
          %s720 = scalar_lea.hbm %s2, %s719
          %s722 = sshll.u32 %s711, 4
          %s723 = int_to_ptr.vmem [resolvable:$true] %s722
          %725 = dma.vmem_to_hbm [thread:$0]  %s723, 128, %s720, %s708
        $region40: #{tpu_custom_call.1} parent=27 // pred_fallthru
          _
      $region28: #{tpu_custom_call.1} parent=5 // pred_fallthru
        _
      %p726 = scmp.le.s32.totalorder 2, %s15
      // Predicated region
      $region41: #{tpu_custom_call.1} parent=5 // pred_check
        %p727 = pneg %p726
      $region42: #{tpu_custom_call.1} parent=5 // pred_check_branch
        %729 = sbr.rel (%p727) target = $region44
      $region43: #{tpu_custom_call.1} parent=5 // pred_region
        %s730 = ssub.s32 %s15, 2
        // Predicated region
        $region45: #{tpu_custom_call.1} parent=43 // pred_check
          %p731 = pneg %p91
        $region46: #{tpu_custom_call.1} parent=43 // pred_check_branch
          %733 = sbr.rel (%p731) target = $region48
        $region47: #{tpu_custom_call.1} parent=43 // pred_region
          %s734 = sand.u32 %s76, 1
          %s735 = scalar_lea.sflag [#allocation4], %s734
          %s736 = sand.u32 %s76, 1
          %s737 = smul.addr %s736, 8
          %s738 = scalar_lea.vmem [#allocation7], %s737
          %739 = dma.done %s735, 128
        $region48: #{tpu_custom_call.1} parent=43 // pred_fallthru
          _
      $region44: #{tpu_custom_call.1} parent=5 // pred_fallthru
        _
    $region6: #{tpu_custom_call.1} parent=1 // loop_footer
      %s19 = sadd.s32 1, %s15
    $region7: #{tpu_custom_call.1} parent=1 // loop_footer_branch
      %14 = sbr.rel target = $region3
    $region8: #{tpu_custom_call.1} parent=1 // loop_exit
      _
    %740 = vsyncpa [#allocation3], 1
    %s741 = scalar_lea.sflag [#allocation3], 1
    %742 = vsyncpa %s741, 1
    %743 = vsyncpa [#allocation6], 1
    %744 = vsyncpa [#allocation4], 1
    %s745 = scalar_lea.sflag [#allocation4], 1
    %746 = vsyncpa %s745, 1

</llo_original>
